<compile_context>
chip_gen: v7x
topology: tpu7x:2x2x1
jax: 0.10.0
libtpu: 0.0.40
codegen_flags: <defaults>
</compile_context>

<pallas_src>
import functools
import math

import jax
import jax.numpy as jnp
from jax import lax
from jax.experimental import pallas as pl
from jax.experimental.pallas import tpu as pltpu


_CompilerParams = getattr(pltpu, "CompilerParams", None) or getattr(
    pltpu, "TPUCompilerParams"
)


def _spec(block_shape, index_map, *, single_buffer=False):
    """BlockSpec helper; requests single buffering for grid-invariant inputs."""
    if single_buffer and hasattr(pl, "Buffered"):
        try:
            return pl.BlockSpec(block_shape, index_map,
                                pipeline_mode=pl.Buffered(1))
        except TypeError:  # older jax without pipeline_mode
            pass
    return pl.BlockSpec(block_shape, index_map)


def _pick_block_q(seq_len, block_q):
    if seq_len <= block_q:
        return seq_len
    for cand in (block_q, 512, 256, 128):
        if cand <= seq_len and seq_len % cand == 0:
            return cand
    # TODO(synk): pad / ragged handling when S has no nice tile divisor.
    return seq_len


# ---------------------------------------------------------------------------
# Fused kernel: one (batch, head) pair per grid step.
# ---------------------------------------------------------------------------
def _mha_kernel(*refs, num_heads, num_q_tiles, block_q, scale, causal, has_mask,
                approx_recip):
    if has_mask:
        (q_ref, k_ref, v_ref, mask_ref,
         wq_ref, bq_ref, wk_ref, bk_ref, wv_ref, bv_ref,
         wo_ref, bo_ref, o_ref, acc_ref) = refs
    else:
        (q_ref, k_ref, v_ref,
         wq_ref, bq_ref, wk_ref, bk_ref, wv_ref, bv_ref,
         wo_ref, bo_ref, o_ref, acc_ref) = refs
        mask_ref = None

    h = pl.program_id(1)
    cdt = q_ref.dtype  # MXU operand dtype (f32 or bf16); accumulation stays f32.

    # Zero the f32 output-projection accumulator at the first head of this batch.
    @pl.when(h == 0)
    def _init():
        acc_ref[...] = jnp.zeros_like(acc_ref)

    # --- per-head projections: [S, D] @ [D, Dh] -> [S, Dh] -------------------
    # 1/sqrt(head_dim) folded into Q (after its bias): touches S*Dh, not S*S.
    qh = (jnp.dot(q_ref[...], wq_ref[...], preferred_element_type=jnp.float32)
          + bq_ref[...]) * scale
    kh = (jnp.dot(k_ref[...], wk_ref[...], preferred_element_type=jnp.float32)
          + bk_ref[...])
    vh = (jnp.dot(v_ref[...], wv_ref[...], preferred_element_type=jnp.float32)
          + bv_ref[...])
    # Cast to the MXU operand dtype once (softmax math stays f32 below).
    qh = qh.astype(cdt)
    kh = kh.astype(cdt)
    vh = vh.astype(cdt)
    wo_h = wo_ref[...]  # [Dh, D] row block of the output projection

    def q_tile(t, carry):
        if num_q_tiles > 1:
            q0 = pl.multiple_of(t * block_q, block_q)
            qblk = lax.dynamic_slice_in_dim(qh, q0, block_q, axis=0)
        else:
            q0 = 0
            qblk = qh

        # scores[i, j] = q_i . k_j  — contract head dims directly (no k.T relayout).
        s = lax.dot_general(qblk, kh, (((1,), (1,)), ((), ())),
                            preferred_element_type=jnp.float32)  # [tq, S] f32

        if causal:
            # Mask built in-kernel: two iota compares (VPU work, hides under MXU).
            row = q0 + lax.broadcasted_iota(jnp.int32, s.shape, 0)
            col = lax.broadcasted_iota(jnp.int32, s.shape, 1)
            s = jnp.where(col <= row, s, -1e30)
        elif mask_ref is not None:
            # int8 mask expanded in-kernel (4x less HBM/VMEM than an f32 bias).
            m = mask_ref[...] if num_q_tiles == 1 else mask_ref[pl.ds(q0, block_q), :]
            s = jnp.where(m != 0, s, -1e30)

        # Numerically-stable softmax over keys; all elementwise math in f32.
        s = s - jnp.max(s, axis=-1, keepdims=True)
        e = jnp.exp(s)
        denom = jnp.sum(e, axis=-1, keepdims=True)
        p = e * pl.reciprocal(denom, approx=approx_recip)
        # dropout(p) is identity at inference time.

        ctx = jnp.dot(p.astype(cdt), vh, preferred_element_type=jnp.float32)  # [tq, Dh]
        # Fused output projection contribution for this head (lane-dense update).
        contrib = jnp.dot(ctx.astype(cdt), wo_h,
                          preferred_element_type=jnp.float32)                 # [tq, D]
        if num_q_tiles > 1:
            acc_ref[pl.ds(q0, block_q), :] += contrib
        else:
            acc_ref[...] += contrib
        return carry

    if num_q_tiles > 1:
        lax.fori_loop(0, num_q_tiles, q_tile, 0)
    else:
        q_tile(0, 0)

    # At the last head: add the output-projection bias and write lane-dense [S, D].
    @pl.when(h == num_heads - 1)
    def _finalize():
        o_ref[...] = (acc_ref[...] + bo_ref[...]).astype(o_ref.dtype)


# ---------------------------------------------------------------------------
# Wrapper
# ---------------------------------------------------------------------------
def multi_head_attention(q, k, v, mask, params, num_heads, *,
                         causal=False, compute_dtype=jnp.bfloat16,
                         block_q=512, approx_recip=True):
    """Full MHA forward. q/k/v: [B, S, D]; mask: [S, S] bool-like (or None, or
    causal=True to generate it in-kernel). Returns [B, S, D] in q.dtype."""
    B, S, D = q.shape
    assert D % num_heads == 0, "model_dim must be divisible by num_heads"
    Dh = D // num_heads
    scale = 1.0 / math.sqrt(Dh)  # pure-Python constant (no device->host transfer)

    tq = _pick_block_q(S, block_q)
    num_q_tiles = S // tq

    cdt = compute_dtype
    to_c = lambda x: x.astype(cdt)

    # Pre-reshape weights so each head's slice is a full (8,128)-friendly block:
    #   wq/wk/wv: [D, D] -> [H, D, Dh] (per-head output-column blocks)
    #   wo      : [D, D] -> [H, Dh, D] (per-head input-row blocks)
    def col_blocks(w):
        return w.reshape(D, num_heads, Dh).transpose(1, 0, 2).astype(cdt)

    wq = col_blocks(params["wq"])
    wk = col_blocks(params["wk"])
    wv = col_blocks(params["wv"])
    wo = params["wo"].reshape(num_heads, Dh, D).astype(cdt)
    # Biases stay f32 (added to f32 accumulators).
    bq = params["bq"].reshape(num_heads, 1, Dh).astype(jnp.float32)
    bk = params["bk"].reshape(num_heads, 1, Dh).astype(jnp.float32)
    bv = params["bv"].reshape(num_heads, 1, Dh).astype(jnp.float32)
    bo = params["bo"].reshape(1, D).astype(jnp.float32)

    has_mask = (mask is not None) and (not causal)

    batch_spec = pl.BlockSpec((None, S, D), lambda b, h: (b, 0, 0))
    head_w = pl.BlockSpec((None, D, Dh), lambda b, h: (h, 0, 0))
    head_wo = pl.BlockSpec((None, Dh, D), lambda b, h: (h, 0, 0))
    head_b = pl.BlockSpec((None, 1, Dh), lambda b, h: (h, 0, 0))

    in_specs = [batch_spec, batch_spec, batch_spec]
    args = [to_c(q), to_c(k), to_c(v)]
    if has_mask:
        in_specs.append(_spec((S, S), lambda b, h: (0, 0), single_buffer=True))
        args.append((jnp.asarray(mask) != 0).astype(jnp.int8))
    in_specs += [head_w, head_b, head_w, head_b, head_w, head_b,
                 head_wo, _spec((1, D), lambda b, h: (0, 0), single_buffer=True)]
    args += [wq, bq, wk, bk, wv, bv, wo, bo]

    # Explicit scoped-VMEM budget derived from the actual block sizes (+ headroom).
    cb = jnp.dtype(cdt).itemsize
    ob = jnp.dtype(q.dtype).itemsize
    est = (3 * 2 * S * D * cb              # q/k/v blocks (double-buffered)
           + 2 * S * D * ob                # output block (double-buffered)
           + S * D * 4                     # f32 accumulator scratch
           + 2 * 4 * D * Dh * cb           # per-head weight slices (x2 buffers)
           + 4 * (Dh + D) * 4              # bias slices
           + (S * S if has_mask else 0)    # int8 mask (single-buffered)
           + 4 * tq * S * 4                # live score temporaries (s, e, p + slack)
           + 6 * S * Dh * 4)               # qh/kh/vh (f32 + cast copies)
    vmem_limit = int(min(max(2 * est, 16 * 1024 * 1024), 64 * 1024 * 1024))

    flops = 8 * B * S * D * D + 4 * B * S * S * D
    transcendentals = B * num_heads * S * S
    bytes_accessed = (4 * B * S * D * cb + 4 * D * D * cb + 4 * D * 4
                      + (S * S if has_mask else 0) + B * S * D * ob)

    kernel = functools.partial(
        _mha_kernel, num_heads=num_heads, num_q_tiles=num_q_tiles, block_q=tq,
        scale=scale, causal=causal, has_mask=has_mask, approx_recip=approx_recip)

    return pl.pallas_call(
        kernel,
        out_shape=jax.ShapeDtypeStruct((B, S, D), q.dtype),
        grid=(B, num_heads),
        in_specs=in_specs,
        out_specs=pl.BlockSpec((None, S, D), lambda b, h: (b, 0, 0)),
        scratch_shapes=[pltpu.VMEM((S, D), jnp.float32)],
        compiler_params=_CompilerParams(
            dimension_semantics=("parallel", "arbitrary"),  # batch || , heads = reduction
            vmem_limit_bytes=vmem_limit,
        ),
        cost_estimate=pl.CostEstimate(
            flops=int(flops), transcendentals=int(transcendentals),
            bytes_accessed=int(bytes_accessed)),
    )(*args)


# ---------------------------------------------------------------------------
# Pure-JAX reference for the correctness check
# ---------------------------------------------------------------------------
def mha_reference(q, k, v, mask, params, num_heads):
    B, S, D = q.shape
    Dh = D // num_heads

    def lin(x, w, b):
        return x @ w + b

    def split(x):
        return x.reshape(B, S, num_heads, Dh).transpose(0, 2, 1, 3)

    Q = split(lin(q, params["wq"], params["bq"]))
    K = split(lin(k, params["wk"], params["bk"]))
    V = split(lin(v, params["wv"], params["bv"]))
    scores = jnp.einsum("bhqd,bhkd->bhqk", Q, K) / jnp.sqrt(jnp.float32(Dh))
    scores = jnp.where(mask[None, None].astype(bool), scores, -jnp.inf)
    p = jax.nn.softmax(scores, axis=-1)
    out = jnp.einsum("bhqk,bhkd->bhqd", p, V)
    out = out.transpose(0, 2, 1, 3).reshape(B, S, D)
    return lin(out, params["wo"], params["bo"])


# ---------------------------------------------------------------------------
if __name__ == "__main__":
    B, S, D, H = 2, 8, 32, 4  # batch, seq, model_dim, num_heads
    dropout_prob = 0.1        # dropout is identity at inference; prob unused

    key = jax.random.PRNGKey(0)
    keys = jax.random.split(key, 12)

    def init_linear(kw, kb, din, dout):
        w = jax.random.normal(kw, (din, dout), jnp.float32) * 0.05
        b = jax.random.normal(kb, (dout,), jnp.float32) * 0.05
        return w, b

    wq, bq = init_linear(keys[0], keys[1], D, D)
    wk, bk = init_linear(keys[2], keys[3], D, D)
    wv, bv = init_linear(keys[4], keys[5], D, D)
    wo, bo = init_linear(keys[6], keys[7], D, D)
    params = dict(wq=wq, bq=bq, wk=wk, bk=bk, wv=wv, bv=bv, wo=wo, bo=bo)

    q = jax.random.normal(keys[8], (B, S, D), jnp.float32)
    k = jax.random.normal(keys[9], (B, S, D), jnp.float32)
    v = jax.random.normal(keys[10], (B, S, D), jnp.float32)
    # causal mask (True = keep), matching `masked_fill_(mask == False, -inf)`
    mask = jnp.tril(jnp.ones((S, S), dtype=jnp.bool_))

    ref = mha_reference(q, k, v, mask, params, H)

    # 1) f32 operands, mask generated in-kernel (causal), exact softmax reciprocal.
    out = multi_head_attention(q, k, v, None, params, H, causal=True,
                               compute_dtype=jnp.float32, approx_recip=False)
    out = jax.block_until_ready(out)
    assert out.shape == (B, S, D) and out.dtype == q.dtype
    assert jnp.allclose(out, ref, atol=2e-3, rtol=2e-3), "f32 causal mismatch"

    # 2) explicit boolean mask streamed as int8 and expanded in-kernel.
    out_m = multi_head_attention(q, k, v, mask, params, H, causal=False,
                                 compute_dtype=jnp.float32, approx_recip=False)
    out_m = jax.block_until_ready(out_m)
    assert jnp.allclose(out_m, ref, atol=2e-3, rtol=2e-3), "f32 int8-mask mismatch"

    # 3) bf16 MXU-operand path (peak-rate on v6e/v7x); f32 accumulation & softmax,
    #    output still returned in the input dtype (f32).
    out_bf = multi_head_attention(q, k, v, None, params, H, causal=True,
                                  compute_dtype=jnp.bfloat16)
    out_bf = jax.block_until_ready(out_bf)
    assert out_bf.dtype == q.dtype
    assert jnp.allclose(out_bf, ref, atol=5e-2, rtol=5e-2), "bf16 mismatch"

    print("KERNEL_OK")
</pallas_src>

<mosaic_0001>
module attributes {stable_mosaic.version = 11 : i64} {
  func.func @_mha_kernel(%arg0: i32, %arg1: i32, %arg2: memref<1x8x32xf32, #tpu.memory_space<vmem>>, %arg3: memref<1x8x32xf32, #tpu.memory_space<vmem>>, %arg4: memref<1x8x32xf32, #tpu.memory_space<vmem>>, %arg5: memref<1x32x8xf32, #tpu.memory_space<vmem>>, %arg6: memref<1x1x8xf32, #tpu.memory_space<vmem>>, %arg7: memref<1x32x8xf32, #tpu.memory_space<vmem>>, %arg8: memref<1x1x8xf32, #tpu.memory_space<vmem>>, %arg9: memref<1x32x8xf32, #tpu.memory_space<vmem>>, %arg10: memref<1x1x8xf32, #tpu.memory_space<vmem>>, %arg11: memref<1x8x32xf32, #tpu.memory_space<vmem>>, %arg12: memref<1x32xf32, #tpu.memory_space<vmem>>, %arg13: memref<1x8x32xf32, #tpu.memory_space<vmem>>, %arg14: memref<8x32xf32, #tpu.memory_space<vmem>>) attributes {dimension_semantics = [#tpu.dimension_semantics<parallel>, #tpu.dimension_semantics<arbitrary>], iteration_bounds = array<i64: 2, 4>, scalar_prefetch = 0 : i64, scratch_operands = 1 : i64, tpu.core_type = #tpu.core_type<tc>, window_params = [{transform_indices = @transform_0, window_bounds = array<i64: 1, 8, 32>}, {transform_indices = @transform_1, window_bounds = array<i64: 1, 8, 32>}, {transform_indices = @transform_2, window_bounds = array<i64: 1, 8, 32>}, {transform_indices = @transform_3, window_bounds = array<i64: 1, 32, 8>}, {transform_indices = @transform_4, window_bounds = array<i64: 1, 1, 8>}, {transform_indices = @transform_5, window_bounds = array<i64: 1, 32, 8>}, {transform_indices = @transform_6, window_bounds = array<i64: 1, 1, 8>}, {transform_indices = @transform_7, window_bounds = array<i64: 1, 32, 8>}, {transform_indices = @transform_8, window_bounds = array<i64: 1, 1, 8>}, {transform_indices = @transform_9, window_bounds = array<i64: 1, 8, 32>}, {pipeline_mode = #tpu.pipeline_mode<synchronous>, transform_indices = @transform_10, window_bounds = array<i64: 1, 32>}, {transform_indices = @transform_11, window_bounds = array<i64: 1, 8, 32>}]} {
    %c0_i32 = arith.constant 0 : i32
    %0 = arith.cmpi eq, %arg1, %c0_i32 : i32
    %1 = arith.extui %0 : i1 to i32
    %c0_i32_0 = arith.constant 0 : i32
    %2 = arith.cmpi ne, %1, %c0_i32_0 : i32
    scf.if %2 {
      %cst_45 = arith.constant 0.000000e+00 : f32
      %60 = vector.broadcast %cst_45 : f32 to vector<8x32xf32>
      %c0_46 = arith.constant 0 : index
      %c0_47 = arith.constant 0 : index
      %61 = vector.load %arg14[%c0_46, %c0_47] : memref<8x32xf32, #tpu.memory_space<vmem>>, vector<8x32xf32>
      tpu.vector_store %arg14[%c0_46, %c0_47], %60 {strides = array<i32>} : memref<8x32xf32, #tpu.memory_space<vmem>>, vector<8x32xf32>,
    } else {
    }
    %c0 = arith.constant 0 : index
    %c0_1 = arith.constant 0 : index
    %c0_2 = arith.constant 0 : index
    %3 = vector.load %arg2[%c0, %c0_1, %c0_2] : memref<1x8x32xf32, #tpu.memory_space<vmem>>, vector<1x8x32xf32>
    %4 = vector.shape_cast %3 : vector<1x8x32xf32> to vector<8x32xf32>
    %c0_3 = arith.constant 0 : index
    %c0_4 = arith.constant 0 : index
    %c0_5 = arith.constant 0 : index
    %5 = vector.load %arg5[%c0_3, %c0_4, %c0_5] : memref<1x32x8xf32, #tpu.memory_space<vmem>>, vector<1x32x8xf32>
    %6 = vector.shape_cast %5 : vector<1x32x8xf32> to vector<32x8xf32>
    %cst = arith.constant dense<0.000000e+00> : vector<8x8xf32>
    %7 = tpu.matmul %4, %6, %cst {dimension_numbers = #tpu.dot_dimension_numbers<[1], [0], [0], [1], [0, 0, 1, 1], [], []>} : vector<8x32xf32>, vector<32x8xf32>, vector<8x8xf32> -> vector<8x8xf32>
    %c0_6 = arith.constant 0 : index
    %c0_7 = arith.constant 0 : index
    %c0_8 = arith.constant 0 : index
    %8 = vector.load %arg6[%c0_6, %c0_7, %c0_8] : memref<1x1x8xf32, #tpu.memory_space<vmem>>, vector<1x1x8xf32>
    %9 = vector.shape_cast %8 : vector<1x1x8xf32> to vector<1x8xf32>
    %10 = vector.broadcast %9 : vector<1x8xf32> to vector<8x8xf32>
    %11 = arith.addf %7, %10 : vector<8x8xf32>
    %cst_9 = arith.constant 0.353553385 : f32
    %12 = vector.broadcast %cst_9 : f32 to vector<8x8xf32>
    %13 = arith.mulf %11, %12 : vector<8x8xf32>
    %c0_10 = arith.constant 0 : index
    %c0_11 = arith.constant 0 : index
    %c0_12 = arith.constant 0 : index
    %14 = vector.load %arg3[%c0_10, %c0_11, %c0_12] : memref<1x8x32xf32, #tpu.memory_space<vmem>>, vector<1x8x32xf32>
    %15 = vector.shape_cast %14 : vector<1x8x32xf32> to vector<8x32xf32>
    %c0_13 = arith.constant 0 : index
    %c0_14 = arith.constant 0 : index
    %c0_15 = arith.constant 0 : index
    %16 = vector.load %arg7[%c0_13, %c0_14, %c0_15] : memref<1x32x8xf32, #tpu.memory_space<vmem>>, vector<1x32x8xf32>
    %17 = vector.shape_cast %16 : vector<1x32x8xf32> to vector<32x8xf32>
    %cst_16 = arith.constant dense<0.000000e+00> : vector<8x8xf32>
    %18 = tpu.matmul %15, %17, %cst_16 {dimension_numbers = #tpu.dot_dimension_numbers<[1], [0], [0], [1], [0, 0, 1, 1], [], []>} : vector<8x32xf32>, vector<32x8xf32>, vector<8x8xf32> -> vector<8x8xf32>
    %c0_17 = arith.constant 0 : index
    %c0_18 = arith.constant 0 : index
    %c0_19 = arith.constant 0 : index
    %19 = vector.load %arg8[%c0_17, %c0_18, %c0_19] : memref<1x1x8xf32, #tpu.memory_space<vmem>>, vector<1x1x8xf32>
    %20 = vector.shape_cast %19 : vector<1x1x8xf32> to vector<1x8xf32>
    %21 = vector.broadcast %20 : vector<1x8xf32> to vector<8x8xf32>
    %22 = arith.addf %18, %21 : vector<8x8xf32>
    %c0_20 = arith.constant 0 : index
    %c0_21 = arith.constant 0 : index
    %c0_22 = arith.constant 0 : index
    %23 = vector.load %arg4[%c0_20, %c0_21, %c0_22] : memref<1x8x32xf32, #tpu.memory_space<vmem>>, vector<1x8x32xf32>
    %24 = vector.shape_cast %23 : vector<1x8x32xf32> to vector<8x32xf32>
    %c0_23 = arith.constant 0 : index
    %c0_24 = arith.constant 0 : index
    %c0_25 = arith.constant 0 : index
    %25 = vector.load %arg9[%c0_23, %c0_24, %c0_25] : memref<1x32x8xf32, #tpu.memory_space<vmem>>, vector<1x32x8xf32>
    %26 = vector.shape_cast %25 : vector<1x32x8xf32> to vector<32x8xf32>
    %cst_26 = arith.constant dense<0.000000e+00> : vector<8x8xf32>
    %27 = tpu.matmul %24, %26, %cst_26 {dimension_numbers = #tpu.dot_dimension_numbers<[1], [0], [0], [1], [0, 0, 1, 1], [], []>} : vector<8x32xf32>, vector<32x8xf32>, vector<8x8xf32> -> vector<8x8xf32>
    %c0_27 = arith.constant 0 : index
    %c0_28 = arith.constant 0 : index
    %c0_29 = arith.constant 0 : index
    %28 = vector.load %arg10[%c0_27, %c0_28, %c0_29] : memref<1x1x8xf32, #tpu.memory_space<vmem>>, vector<1x1x8xf32>
    %29 = vector.shape_cast %28 : vector<1x1x8xf32> to vector<1x8xf32>
    %30 = vector.broadcast %29 : vector<1x8xf32> to vector<8x8xf32>
    %31 = arith.addf %27, %30 : vector<8x8xf32>
    %c0_30 = arith.constant 0 : index
    %c0_31 = arith.constant 0 : index
    %c0_32 = arith.constant 0 : index
    %32 = vector.load %arg11[%c0_30, %c0_31, %c0_32] : memref<1x8x32xf32, #tpu.memory_space<vmem>>, vector<1x8x32xf32>
    %33 = vector.shape_cast %32 : vector<1x8x32xf32> to vector<8x32xf32>
    %cst_33 = arith.constant dense<0.000000e+00> : vector<8x8xf32>
    %34 = tpu.matmul %13, %22, %cst_33 {dimension_numbers = #tpu.dot_dimension_numbers<[1], [1], [0], [0], [0, 0, 1, 0], [], []>} : vector<8x8xf32>, vector<8x8xf32>, vector<8x8xf32> -> vector<8x8xf32>
    %35 = tpu.iota {dimensions = array<i32: 0>} : vector<8x8xi32>
    %c0_i32_34 = arith.constant 0 : i32
    %36 = vector.broadcast %c0_i32_34 : i32 to vector<8x8xi32>
    %37 = arith.addi %36, %35 : vector<8x8xi32>
    %38 = tpu.iota {dimensions = array<i32: 1>} : vector<8x8xi32>
    %39 = arith.cmpi sle, %38, %37 : vector<8x8xi32>
    %cst_35 = arith.constant -1.000000e+30 : f32
    %40 = vector.broadcast %cst_35 : f32 to vector<8x8xf32>
    %41 = arith.select %39, %34, %40 : vector<8x8xi1>, vector<8x8xf32>
    %cst_36 = arith.constant dense<0xFF800000> : vector<8xf32>
    %42 = vector.multi_reduction <maximumf>, %41, %cst_36 [1] : vector<8x8xf32> to vector<8xf32>
    %43 = vector.shape_cast %42 : vector<8xf32> to vector<8x1xf32>
    %44 = vector.broadcast %43 : vector<8x1xf32> to vector<8x8xf32>
    %45 = arith.subf %41, %44 : vector<8x8xf32>
    %46 = math.exp %45 : vector<8x8xf32>
    %cst_37 = arith.constant dense<0.000000e+00> : vector<8xf32>
    %47 = vector.multi_reduction <add>, %46, %cst_37 [1] : vector<8x8xf32> to vector<8xf32>
    %48 = vector.shape_cast %47 : vector<8xf32> to vector<8x1xf32>
    %49 = tpu.reciprocal %48 : vector<8x1xf32> -> vector<8x1xf32>
    %50 = vector.broadcast %49 : vector<8x1xf32> to vector<8x8xf32>
    %51 = arith.mulf %46, %50 : vector<8x8xf32>
    %cst_38 = arith.constant dense<0.000000e+00> : vector<8x8xf32>
    %52 = tpu.matmul %51, %31, %cst_38 {dimension_numbers = #tpu.dot_dimension_numbers<[1], [0], [0], [1], [0, 0, 1, 1], [], []>} : vector<8x8xf32>, vector<8x8xf32>, vector<8x8xf32> -> vector<8x8xf32>
    %cst_39 = arith.constant dense<0.000000e+00> : vector<8x32xf32>
    %53 = tpu.matmul %52, %33, %cst_39 {dimension_numbers = #tpu.dot_dimension_numbers<[1], [0], [0], [1], [0, 0, 1, 1], [], []>} : vector<8x8xf32>, vector<8x32xf32>, vector<8x32xf32> -> vector<8x32xf32>
    %c0_40 = arith.constant 0 : index
    %c0_41 = arith.constant 0 : index
    %54 = vector.load %arg14[%c0_40, %c0_41] : memref<8x32xf32, #tpu.memory_space<vmem>>, vector<8x32xf32>
    %55 = arith.addf %54, %53 : vector<8x32xf32>
    %c0_42 = arith.constant 0 : index
    %c0_43 = arith.constant 0 : index
    %56 = vector.load %arg14[%c0_42, %c0_43] : memref<8x32xf32, #tpu.memory_space<vmem>>, vector<8x32xf32>
    tpu.vector_store %arg14[%c0_42, %c0_43], %55 {strides = array<i32>} : memref<8x32xf32, #tpu.memory_space<vmem>>, vector<8x32xf32>,
    %c3_i32 = arith.constant 3 : i32
    %57 = arith.cmpi eq, %arg1, %c3_i32 : i32
    %58 = arith.extui %57 : i1 to i32
    %c0_i32_44 = arith.constant 0 : i32
    %59 = arith.cmpi ne, %58, %c0_i32_44 : i32
    scf.if %59 {
      %c0_45 = arith.constant 0 : index
      %c0_46 = arith.constant 0 : index
      %60 = vector.load %arg14[%c0_45, %c0_46] : memref<8x32xf32, #tpu.memory_space<vmem>>, vector<8x32xf32>
      %c0_47 = arith.constant 0 : index
      %c0_48 = arith.constant 0 : index
      %61 = vector.load %arg12[%c0_47, %c0_48] : memref<1x32xf32, #tpu.memory_space<vmem>>, vector<1x32xf32>
      %62 = vector.broadcast %61 : vector<1x32xf32> to vector<8x32xf32>
      %63 = arith.addf %60, %62 : vector<8x32xf32>
      %c0_49 = arith.constant 0 : index
      %c0_50 = arith.constant 0 : index
      %c0_51 = arith.constant 0 : index
      %64 = vector.load %arg13[%c0_49, %c0_50, %c0_51] : memref<1x8x32xf32, #tpu.memory_space<vmem>>, vector<1x8x32xf32>
      %65 = vector.shape_cast %64 : vector<1x8x32xf32> to vector<8x32xf32>
      %66 = vector.shape_cast %63 : vector<8x32xf32> to vector<1x8x32xf32>
      tpu.vector_store %arg13[%c0_49, %c0_50, %c0_51], %66 {strides = array<i32>} : memref<1x8x32xf32, #tpu.memory_space<vmem>>, vector<1x8x32xf32>,
    } else {
    }
    return
  }
  func.func @transform_0(%arg0: i32, %arg1: i32) -> (i32, i32, i32) {
    %c0_i32 = arith.constant 0 : i32
    %c0_i32_0 = arith.constant 0 : i32
    %c0_i32_1 = arith.constant 0 : i32
    return %arg0, %c0_i32, %c0_i32_0 : i32, i32, i32
  }
  func.func @transform_1(%arg0: i32, %arg1: i32) -> (i32, i32, i32) {
    %c0_i32 = arith.constant 0 : i32
    %c0_i32_0 = arith.constant 0 : i32
    %c0_i32_1 = arith.constant 0 : i32
    return %arg0, %c0_i32, %c0_i32_0 : i32, i32, i32
  }
  func.func @transform_2(%arg0: i32, %arg1: i32) -> (i32, i32, i32) {
    %c0_i32 = arith.constant 0 : i32
    %c0_i32_0 = arith.constant 0 : i32
    %c0_i32_1 = arith.constant 0 : i32
    return %arg0, %c0_i32, %c0_i32_0 : i32, i32, i32
  }
  func.func @transform_3(%arg0: i32, %arg1: i32) -> (i32, i32, i32) {
    %c0_i32 = arith.constant 0 : i32
    %c0_i32_0 = arith.constant 0 : i32
    %c0_i32_1 = arith.constant 0 : i32
    return %arg1, %c0_i32, %c0_i32_0 : i32, i32, i32
  }
  func.func @transform_4(%arg0: i32, %arg1: i32) -> (i32, i32, i32) {
    %c0_i32 = arith.constant 0 : i32
    %c0_i32_0 = arith.constant 0 : i32
    %c0_i32_1 = arith.constant 0 : i32
    return %arg1, %c0_i32, %c0_i32_0 : i32, i32, i32
  }
  func.func @transform_5(%arg0: i32, %arg1: i32) -> (i32, i32, i32) {
    %c0_i32 = arith.constant 0 : i32
    %c0_i32_0 = arith.constant 0 : i32
    %c0_i32_1 = arith.constant 0 : i32
    return %arg1, %c0_i32, %c0_i32_0 : i32, i32, i32
  }
  func.func @transform_6(%arg0: i32, %arg1: i32) -> (i32, i32, i32) {
    %c0_i32 = arith.constant 0 : i32
    %c0_i32_0 = arith.constant 0 : i32
    %c0_i32_1 = arith.constant 0 : i32
    return %arg1, %c0_i32, %c0_i32_0 : i32, i32, i32
  }
  func.func @transform_7(%arg0: i32, %arg1: i32) -> (i32, i32, i32) {
    %c0_i32 = arith.constant 0 : i32
    %c0_i32_0 = arith.constant 0 : i32
    %c0_i32_1 = arith.constant 0 : i32
    return %arg1, %c0_i32, %c0_i32_0 : i32, i32, i32
  }
  func.func @transform_8(%arg0: i32, %arg1: i32) -> (i32, i32, i32) {
    %c0_i32 = arith.constant 0 : i32
    %c0_i32_0 = arith.constant 0 : i32
    %c0_i32_1 = arith.constant 0 : i32
    return %arg1, %c0_i32, %c0_i32_0 : i32, i32, i32
  }
  func.func @transform_9(%arg0: i32, %arg1: i32) -> (i32, i32, i32) {
    %c0_i32 = arith.constant 0 : i32
    %c0_i32_0 = arith.constant 0 : i32
    %c0_i32_1 = arith.constant 0 : i32
    return %arg1, %c0_i32, %c0_i32_0 : i32, i32, i32
  }
  func.func @transform_10(%arg0: i32, %arg1: i32) -> (i32, i32) {
    %c0_i32 = arith.constant 0 : i32
    %c0_i32_0 = arith.constant 0 : i32
    %c0_i32_1 = arith.constant 0 : i32
    return %c0_i32, %c0_i32_0 : i32, i32
  }
  func.func @transform_11(%arg0: i32, %arg1: i32) -> (i32, i32, i32) {
    %c0_i32 = arith.constant 0 : i32
    %c0_i32_0 = arith.constant 0 : i32
    %c0_i32_1 = arith.constant 0 : i32
    return %arg0, %c0_i32, %c0_i32_0 : i32, i32, i32
  }
}

</mosaic_0001>

<llo_original>
// kernel: tpu_custom_call.1
$region0: #{tpu_custom_call.1}
  #allocation0 [shape = 'u32[]', space=smem, size = 0x4, offset = 0x4, fixed_abs, tag = 'smem constant byte address 0x4 - core index']
  #allocation1 [shape = 'u32[144,128]{1,0:T(1,128)}', space=vmem, size = 0x12000, scoped, tag = 'internal scratch']
  #allocation2 [shape = 'f32[8,32]{1,0:T(8,128)}', space=vmem, size = 0x1000, scoped, tag = 'scratch operand']
  %s0 = inlined_call_operand.vmem [shape: f32[2,8,32], index: 0, kind: input, shape index: {}]
  %s1 = inlined_call_operand.vmem [shape: f32[2,8,32], index: 1, kind: input, shape index: {}]
  %s2 = inlined_call_operand.vmem [shape: f32[2,8,32], index: 2, kind: input, shape index: {}]
  %s3 = inlined_call_operand.vmem [shape: f32[4,32,8], index: 3, kind: input, shape index: {}]
  %s4 = inlined_call_operand.vmem [shape: f32[4,1,8], index: 4, kind: input, shape index: {}]
  %s5 = inlined_call_operand.vmem [shape: f32[4,32,8], index: 5, kind: input, shape index: {}]
  %s6 = inlined_call_operand.vmem [shape: f32[4,1,8], index: 6, kind: input, shape index: {}]
  %s7 = inlined_call_operand.vmem [shape: f32[4,32,8], index: 7, kind: input, shape index: {}]
  %s8 = inlined_call_operand.vmem [shape: f32[4,1,8], index: 8, kind: input, shape index: {}]
  %s9 = inlined_call_operand.vmem [shape: f32[4,8,32], index: 9, kind: input, shape index: {}]
  %s10 = inlined_call_operand.vmem [shape: f32[1,32], index: 10, kind: input, shape index: {}]
  %s11 = inlined_call_operand.hbm [shape: f32[2,8,32], index: 11, kind: output, shape index: {}]
  %s12 = sld [smem:[#allocation0]]
  $region85: #{tpu_custom_call.1} parent=0
    _
  %s14 = ssub.s32 1, %s12
  %s15 = scalar_select 0, %s14, %s12
  $region1: #{tpu_custom_call.1} parent=0
    #allocation3 [shape = 'u8[8192]{0}', space=vmem, size = 0x2000, scoped, tag = 'output window, operand 0']
    #allocation4 [shape = 's32[2]{0}', space=sflag, size = 0x8, scoped, tag = 'scoped memory for tpu_custom_call.1']
    %16 = vsyncpa [#allocation4], 0
    %s17 = scalar_lea.sflag [#allocation4], 1
    %18 = vsyncpa %s17, 0
    loop: start=0, step=1, limit=10
    $region2: #{tpu_custom_call.1} parent=1 // loop_pre_header
      _
    $region3: #{tpu_custom_call.1} parent=1 // loop_header
      %s20 = sphi 0, %s24
      %p21 = scmp.ge.s32.totalorder %s20, 10
      %s27 = sphi 0, %s39
      %s28 = sphi 0, %s35
      %s29 = sphi 0, %s27
      %s30 = sphi 0, %s28
      %s31 = sphi 0, %s29
      %s32 = sphi 0, %s30
      %s42 = sphi 0, %s44
      %s45 = sphi 0, %s42
      %s46 = sphi 0, %s45
      %s62 = sphi 0, %s46
      %s68 = sphi 0, %s70
      %s71 = sphi 0, %s68
      %s72 = sphi 0, %s71
      %s88 = sphi 0, %s72
      %s94 = sphi 0, %s96
      %s97 = sphi 0, %s94
      %s98 = sphi 0, %s97
      %s114 = sphi 0, %s98
      %s120 = sphi 0, %s122
      %s123 = sphi 0, %s120
      %s124 = sphi 0, %s123
      %s140 = sphi 0, %s124
      %s146 = sphi 0, %s148
      %s149 = sphi 0, %s146
      %s150 = sphi 0, %s149
      %s166 = sphi 0, %s150
      %s172 = sphi 0, %s174
      %s175 = sphi 0, %s172
      %s176 = sphi 0, %s175
      %s192 = sphi 0, %s176
      %s198 = sphi 0, %s200
      %s201 = sphi 0, %s198
      %s202 = sphi 0, %s201
      %s218 = sphi 0, %s202
      %s224 = sphi 0, %s226
      %s227 = sphi 0, %s224
      %s228 = sphi 0, %s227
      %s244 = sphi 0, %s228
      %s250 = sphi 0, %s252
      %s253 = sphi 0, %s250
      %s254 = sphi 0, %s253
      %s270 = sphi 0, %s254
      %s276 = sphi 0, %s278
      %s279 = sphi 0, %s276
      %s280 = sphi 0, %s279
      %s296 = sphi 0, %s280
      %s300 = sphi 0, %s300
      %s302 = sphi 0, %s300
      %s303 = sphi 0, %s302
      %s317 = sphi 0, %s303
      %s323 = sphi 0, %s325
      %s326 = sphi 0, %s323
      %s327 = sphi 0, %s326
      %s343 = sphi 0, %s327
    $region4: #{tpu_custom_call.1} parent=1 // loop_header_branch
      %23 = sbr.rel (%p21) target = $region8
    $region5: #{tpu_custom_call.1} parent=1 // loop_body
      %s25 = ssub.s32 %s20, 1
      %s26 = ssub.s32 %s20, 2
      %s33 = sadd.s32 1, %s28
      %p34 = scmp.ge.s32.totalorder %s33, 4
      %s35 = scalar_select %p34, 0, %s33
      %s36 = sadd.s32 1, %s27
      %s37 = scalar_select %p34, %s36, %s27
      %p38 = scmp.ge.s32.totalorder %s37, 2
      %s39 = scalar_select %p38, 0, %s37
      %s40 = ssub.s32 %s27, %s39
      %p41 = scmp.eq.s32.totalorder %s40, 0
      %s43 = sadd.s32 %s42, 1
      %s44 = scalar_select %p41, %s42, %s43
      %p47 = pneg %p41
      %p48 = scmp.eq.s32.totalorder %s20, 7
      %p49 = por %p47, %p48
      %p50 = scmp.ne.s32.totalorder %s42, %s45
      %p51 = scmp.eq.s32.totalorder %s20, 0
      %p52 = por %p50, %p51
      %p53 = scmp.ne.s32.totalorder %s42, %s45
      %p54 = scmp.eq.s32.totalorder %s25, 7
      %p55 = por %p53, %p54
      %p56 = scmp.ne.s32.totalorder %s45, %s46
      %p57 = scmp.eq.s32.totalorder %s25, 0
      %p58 = por %p56, %p57
      %p59 = scmp.ne.s32.totalorder %s45, %s46
      %p60 = scmp.eq.s32.totalorder %s26, 7
      %p61 = por %p59, %p60
      %p63 = scmp.ne.s32.totalorder %s46, %s62
      %p64 = scmp.eq.s32.totalorder %s26, 0
      %p65 = por %p63, %p64
      %s66 = ssub.s32 %s27, %s39
      %p67 = scmp.eq.s32.totalorder %s66, 0
      %s69 = sadd.s32 %s68, 1
      %s70 = scalar_select %p67, %s68, %s69
      %p73 = pneg %p67
      %p74 = scmp.eq.s32.totalorder %s20, 7
      %p75 = por %p73, %p74
      %p76 = scmp.ne.s32.totalorder %s68, %s71
      %p77 = scmp.eq.s32.totalorder %s20, 0
      %p78 = por %p76, %p77
      %p79 = scmp.ne.s32.totalorder %s68, %s71
      %p80 = scmp.eq.s32.totalorder %s25, 7
      %p81 = por %p79, %p80
      %p82 = scmp.ne.s32.totalorder %s71, %s72
      %p83 = scmp.eq.s32.totalorder %s25, 0
      %p84 = por %p82, %p83
      %p85 = scmp.ne.s32.totalorder %s71, %s72
      %p86 = scmp.eq.s32.totalorder %s26, 7
      %p87 = por %p85, %p86
      %p89 = scmp.ne.s32.totalorder %s72, %s88
      %p90 = scmp.eq.s32.totalorder %s26, 0
      %p91 = por %p89, %p90
      %s92 = ssub.s32 %s27, %s39
      %p93 = scmp.eq.s32.totalorder %s92, 0
      %s95 = sadd.s32 %s94, 1
      %s96 = scalar_select %p93, %s94, %s95
      %p99 = pneg %p93
      %p100 = scmp.eq.s32.totalorder %s20, 7
      %p101 = por %p99, %p100
      %p102 = scmp.ne.s32.totalorder %s94, %s97
      %p103 = scmp.eq.s32.totalorder %s20, 0
      %p104 = por %p102, %p103
      %p105 = scmp.ne.s32.totalorder %s94, %s97
      %p106 = scmp.eq.s32.totalorder %s25, 7
      %p107 = por %p105, %p106
      %p108 = scmp.ne.s32.totalorder %s97, %s98
      %p109 = scmp.eq.s32.totalorder %s25, 0
      %p110 = por %p108, %p109
      %p111 = scmp.ne.s32.totalorder %s97, %s98
      %p112 = scmp.eq.s32.totalorder %s26, 7
      %p113 = por %p111, %p112
      %p115 = scmp.ne.s32.totalorder %s98, %s114
      %p116 = scmp.eq.s32.totalorder %s26, 0
      %p117 = por %p115, %p116
      %s118 = ssub.s32 %s28, %s35
      %p119 = scmp.eq.s32.totalorder %s118, 0
      %s121 = sadd.s32 %s120, 1
      %s122 = scalar_select %p119, %s120, %s121
      %p125 = pneg %p119
      %p126 = scmp.eq.s32.totalorder %s20, 7
      %p127 = por %p125, %p126
      %p128 = scmp.ne.s32.totalorder %s120, %s123
      %p129 = scmp.eq.s32.totalorder %s20, 0
      %p130 = por %p128, %p129
      %p131 = scmp.ne.s32.totalorder %s120, %s123
      %p132 = scmp.eq.s32.totalorder %s25, 7
      %p133 = por %p131, %p132
      %p134 = scmp.ne.s32.totalorder %s123, %s124
      %p135 = scmp.eq.s32.totalorder %s25, 0
      %p136 = por %p134, %p135
      %p137 = scmp.ne.s32.totalorder %s123, %s124
      %p138 = scmp.eq.s32.totalorder %s26, 7
      %p139 = por %p137, %p138
      %p141 = scmp.ne.s32.totalorder %s124, %s140
      %p142 = scmp.eq.s32.totalorder %s26, 0
      %p143 = por %p141, %p142
      %s144 = ssub.s32 %s28, %s35
      %p145 = scmp.eq.s32.totalorder %s144, 0
      %s147 = sadd.s32 %s146, 1
      %s148 = scalar_select %p145, %s146, %s147
      %p151 = pneg %p145
      %p152 = scmp.eq.s32.totalorder %s20, 7
      %p153 = por %p151, %p152
      %p154 = scmp.ne.s32.totalorder %s146, %s149
      %p155 = scmp.eq.s32.totalorder %s20, 0
      %p156 = por %p154, %p155
      %p157 = scmp.ne.s32.totalorder %s146, %s149
      %p158 = scmp.eq.s32.totalorder %s25, 7
      %p159 = por %p157, %p158
      %p160 = scmp.ne.s32.totalorder %s149, %s150
      %p161 = scmp.eq.s32.totalorder %s25, 0
      %p162 = por %p160, %p161
      %p163 = scmp.ne.s32.totalorder %s149, %s150
      %p164 = scmp.eq.s32.totalorder %s26, 7
      %p165 = por %p163, %p164
      %p167 = scmp.ne.s32.totalorder %s150, %s166
      %p168 = scmp.eq.s32.totalorder %s26, 0
      %p169 = por %p167, %p168
      %s170 = ssub.s32 %s28, %s35
      %p171 = scmp.eq.s32.totalorder %s170, 0
      %s173 = sadd.s32 %s172, 1
      %s174 = scalar_select %p171, %s172, %s173
      %p177 = pneg %p171
      %p178 = scmp.eq.s32.totalorder %s20, 7
      %p179 = por %p177, %p178
      %p180 = scmp.ne.s32.totalorder %s172, %s175
      %p181 = scmp.eq.s32.totalorder %s20, 0
      %p182 = por %p180, %p181
      %p183 = scmp.ne.s32.totalorder %s172, %s175
      %p184 = scmp.eq.s32.totalorder %s25, 7
      %p185 = por %p183, %p184
      %p186 = scmp.ne.s32.totalorder %s175, %s176
      %p187 = scmp.eq.s32.totalorder %s25, 0
      %p188 = por %p186, %p187
      %p189 = scmp.ne.s32.totalorder %s175, %s176
      %p190 = scmp.eq.s32.totalorder %s26, 7
      %p191 = por %p189, %p190
      %p193 = scmp.ne.s32.totalorder %s176, %s192
      %p194 = scmp.eq.s32.totalorder %s26, 0
      %p195 = por %p193, %p194
      %s196 = ssub.s32 %s28, %s35
      %p197 = scmp.eq.s32.totalorder %s196, 0
      %s199 = sadd.s32 %s198, 1
      %s200 = scalar_select %p197, %s198, %s199
      %p203 = pneg %p197
      %p204 = scmp.eq.s32.totalorder %s20, 7
      %p205 = por %p203, %p204
      %p206 = scmp.ne.s32.totalorder %s198, %s201
      %p207 = scmp.eq.s32.totalorder %s20, 0
      %p208 = por %p206, %p207
      %p209 = scmp.ne.s32.totalorder %s198, %s201
      %p210 = scmp.eq.s32.totalorder %s25, 7
      %p211 = por %p209, %p210
      %p212 = scmp.ne.s32.totalorder %s201, %s202
      %p213 = scmp.eq.s32.totalorder %s25, 0
      %p214 = por %p212, %p213
      %p215 = scmp.ne.s32.totalorder %s201, %s202
      %p216 = scmp.eq.s32.totalorder %s26, 7
      %p217 = por %p215, %p216
      %p219 = scmp.ne.s32.totalorder %s202, %s218
      %p220 = scmp.eq.s32.totalorder %s26, 0
      %p221 = por %p219, %p220
      %s222 = ssub.s32 %s28, %s35
      %p223 = scmp.eq.s32.totalorder %s222, 0
      %s225 = sadd.s32 %s224, 1
      %s226 = scalar_select %p223, %s224, %s225
      %p229 = pneg %p223
      %p230 = scmp.eq.s32.totalorder %s20, 7
      %p231 = por %p229, %p230
      %p232 = scmp.ne.s32.totalorder %s224, %s227
      %p233 = scmp.eq.s32.totalorder %s20, 0
      %p234 = por %p232, %p233
      %p235 = scmp.ne.s32.totalorder %s224, %s227
      %p236 = scmp.eq.s32.totalorder %s25, 7
      %p237 = por %p235, %p236
      %p238 = scmp.ne.s32.totalorder %s227, %s228
      %p239 = scmp.eq.s32.totalorder %s25, 0
      %p240 = por %p238, %p239
      %p241 = scmp.ne.s32.totalorder %s227, %s228
      %p242 = scmp.eq.s32.totalorder %s26, 7
      %p243 = por %p241, %p242
      %p245 = scmp.ne.s32.totalorder %s228, %s244
      %p246 = scmp.eq.s32.totalorder %s26, 0
      %p247 = por %p245, %p246
      %s248 = ssub.s32 %s28, %s35
      %p249 = scmp.eq.s32.totalorder %s248, 0
      %s251 = sadd.s32 %s250, 1
      %s252 = scalar_select %p249, %s250, %s251
      %p255 = pneg %p249
      %p256 = scmp.eq.s32.totalorder %s20, 7
      %p257 = por %p255, %p256
      %p258 = scmp.ne.s32.totalorder %s250, %s253
      %p259 = scmp.eq.s32.totalorder %s20, 0
      %p260 = por %p258, %p259
      %p261 = scmp.ne.s32.totalorder %s250, %s253
      %p262 = scmp.eq.s32.totalorder %s25, 7
      %p263 = por %p261, %p262
      %p264 = scmp.ne.s32.totalorder %s253, %s254
      %p265 = scmp.eq.s32.totalorder %s25, 0
      %p266 = por %p264, %p265
      %p267 = scmp.ne.s32.totalorder %s253, %s254
      %p268 = scmp.eq.s32.totalorder %s26, 7
      %p269 = por %p267, %p268
      %p271 = scmp.ne.s32.totalorder %s254, %s270
      %p272 = scmp.eq.s32.totalorder %s26, 0
      %p273 = por %p271, %p272
      %s274 = ssub.s32 %s28, %s35
      %p275 = scmp.eq.s32.totalorder %s274, 0
      %s277 = sadd.s32 %s276, 1
      %s278 = scalar_select %p275, %s276, %s277
      %p281 = pneg %p275
      %p282 = scmp.eq.s32.totalorder %s20, 7
      %p283 = por %p281, %p282
      %p284 = scmp.ne.s32.totalorder %s276, %s279
      %p285 = scmp.eq.s32.totalorder %s20, 0
      %p286 = por %p284, %p285
      %p287 = scmp.ne.s32.totalorder %s276, %s279
      %p288 = scmp.eq.s32.totalorder %s25, 7
      %p289 = por %p287, %p288
      %p290 = scmp.ne.s32.totalorder %s279, %s280
      %p291 = scmp.eq.s32.totalorder %s25, 0
      %p292 = por %p290, %p291
      %p293 = scmp.ne.s32.totalorder %s279, %s280
      %p294 = scmp.eq.s32.totalorder %s26, 7
      %p295 = por %p293, %p294
      %p297 = scmp.ne.s32.totalorder %s280, %s296
      %p298 = scmp.eq.s32.totalorder %s26, 0
      %p299 = por %p297, %p298
      %s301 = sadd.s32 %s300, 1
      %p304 = scmp.eq.s32.totalorder %s20, 7
      %p305 = scmp.ne.s32.totalorder %s300, %s302
      %p306 = scmp.eq.s32.totalorder %s20, 0
      %p307 = por %p305, %p306
      %p308 = scmp.ne.s32.totalorder %s300, %s302
      %p309 = scmp.eq.s32.totalorder %s25, 7
      %p310 = por %p308, %p309
      %p311 = scmp.ne.s32.totalorder %s302, %s303
      %p312 = scmp.eq.s32.totalorder %s25, 0
      %p313 = por %p311, %p312
      %p314 = scmp.ne.s32.totalorder %s302, %s303
      %p315 = scmp.eq.s32.totalorder %s26, 7
      %p316 = por %p314, %p315
      %p318 = scmp.ne.s32.totalorder %s303, %s317
      %p319 = scmp.eq.s32.totalorder %s26, 0
      %p320 = por %p318, %p319
      %s321 = ssub.s32 %s27, %s39
      %p322 = scmp.eq.s32.totalorder %s321, 0
      %s324 = sadd.s32 %s323, 1
      %s325 = scalar_select %p322, %s323, %s324
      %p328 = pneg %p322
      %p329 = scmp.eq.s32.totalorder %s20, 7
      %p330 = por %p328, %p329
      %p331 = scmp.ne.s32.totalorder %s323, %s326
      %p332 = scmp.eq.s32.totalorder %s20, 0
      %p333 = por %p331, %p332
      %p334 = scmp.ne.s32.totalorder %s323, %s326
      %p335 = scmp.eq.s32.totalorder %s25, 7
      %p336 = por %p334, %p335
      %p337 = scmp.ne.s32.totalorder %s326, %s327
      %p338 = scmp.eq.s32.totalorder %s25, 0
      %p339 = por %p337, %p338
      %p340 = scmp.ne.s32.totalorder %s326, %s327
      %p341 = scmp.eq.s32.totalorder %s26, 7
      %p342 = por %p340, %p341
      %p344 = scmp.ne.s32.totalorder %s327, %s343
      %p345 = scmp.eq.s32.totalorder %s26, 0
      %p346 = por %p344, %p345
      %p347 = scmp.le.s32.totalorder 1, %s20
      %p348 = scmp.lt.s32.totalorder %s20, 9
      %p349 = pnand %p347, %p348
      %p350 = pneg %p349
      // Predicated region
      $region9: #{tpu_custom_call.1} parent=5 // pred_check
        _
      $region10: #{tpu_custom_call.1} parent=5 // pred_check_branch
        %352 = sbr.rel (%p349) target = $region12
      $region11: #{tpu_custom_call.1} parent=5 // pred_region
        %s353 = ssub.s32 %s20, 1
        // Predicated region
        $region13: #{tpu_custom_call.1} parent=11 // pred_check
          %p354 = pneg %p313
        $region14: #{tpu_custom_call.1} parent=11 // pred_check_branch
          %356 = sbr.rel (%p354) target = $region16
        $region15: #{tpu_custom_call.1} parent=11 // pred_region
          _
        $region16: #{tpu_custom_call.1} parent=11 // pred_fallthru
          _
      $region12: #{tpu_custom_call.1} parent=5 // pred_fallthru
        _
      %p357 = scmp.lt.s32.totalorder %s20, 8
      // Predicated region
      $region17: #{tpu_custom_call.1} parent=5 // pred_check
        %p358 = pneg %p357
      $region18: #{tpu_custom_call.1} parent=5 // pred_check_branch
        %360 = sbr.rel (%p358) target = $region20
      $region19: #{tpu_custom_call.1} parent=5 // pred_region
        // Predicated region
        $region21: #{tpu_custom_call.1} parent=19 // pred_check
          %p361 = pneg %p52
        $region22: #{tpu_custom_call.1} parent=19 // pred_check_branch
          %363 = sbr.rel (%p361) target = $region24
        $region23: #{tpu_custom_call.1} parent=19 // pred_region
          %p364 = scmp.lt.s32.totalorder %s27, 1
          %s365 = scalar_select %p364, %s27, 1
          %s366 = smul.addr %s365, 8
          %s367 = scalar_lea.vmem %s0, %s366
        $region24: #{tpu_custom_call.1} parent=19 // pred_fallthru
          _
        // Predicated region
        $region25: #{tpu_custom_call.1} parent=19 // pred_check
          %p368 = pneg %p78
        $region26: #{tpu_custom_call.1} parent=19 // pred_check_branch
          %370 = sbr.rel (%p368) target = $region28
        $region27: #{tpu_custom_call.1} parent=19 // pred_region
          %p371 = scmp.lt.s32.totalorder %s27, 1
          %s372 = scalar_select %p371, %s27, 1
          %s373 = smul.addr %s372, 8
          %s374 = scalar_lea.vmem %s1, %s373
        $region28: #{tpu_custom_call.1} parent=19 // pred_fallthru
          _
        // Predicated region
        $region29: #{tpu_custom_call.1} parent=19 // pred_check
          %p375 = pneg %p104
        $region30: #{tpu_custom_call.1} parent=19 // pred_check_branch
          %377 = sbr.rel (%p375) target = $region32
        $region31: #{tpu_custom_call.1} parent=19 // pred_region
          %p378 = scmp.lt.s32.totalorder %s27, 1
          %s379 = scalar_select %p378, %s27, 1
          %s380 = smul.addr %s379, 8
          %s381 = scalar_lea.vmem %s2, %s380
        $region32: #{tpu_custom_call.1} parent=19 // pred_fallthru
          _
        // Predicated region
        $region33: #{tpu_custom_call.1} parent=19 // pred_check
          %p382 = pneg %p130
        $region34: #{tpu_custom_call.1} parent=19 // pred_check_branch
          %384 = sbr.rel (%p382) target = $region36
        $region35: #{tpu_custom_call.1} parent=19 // pred_region
          %p385 = scmp.lt.s32.totalorder %s28, 3
          %s386 = scalar_select %p385, %s28, 3
          %s387 = smul.addr %s386, 4
          %s388 = smul.addr %s387, 8
          %s389 = scalar_lea.vmem %s3, %s388
        $region36: #{tpu_custom_call.1} parent=19 // pred_fallthru
          _
        // Predicated region
        $region37: #{tpu_custom_call.1} parent=19 // pred_check
          %p390 = pneg %p156
        $region38: #{tpu_custom_call.1} parent=19 // pred_check_branch
          %392 = sbr.rel (%p390) target = $region40
        $region39: #{tpu_custom_call.1} parent=19 // pred_region
          %p393 = scmp.lt.s32.totalorder %s28, 3
          %s394 = scalar_select %p393, %s28, 3
          %s395 = scalar_lea.vmem %s4, %s394
        $region40: #{tpu_custom_call.1} parent=19 // pred_fallthru
          _
        // Predicated region
        $region41: #{tpu_custom_call.1} parent=19 // pred_check
          %p396 = pneg %p182
        $region42: #{tpu_custom_call.1} parent=19 // pred_check_branch
          %398 = sbr.rel (%p396) target = $region44
        $region43: #{tpu_custom_call.1} parent=19 // pred_region
          %p399 = scmp.lt.s32.totalorder %s28, 3
          %s400 = scalar_select %p399, %s28, 3
          %s401 = smul.addr %s400, 4
          %s402 = smul.addr %s401, 8
          %s403 = scalar_lea.vmem %s5, %s402
        $region44: #{tpu_custom_call.1} parent=19 // pred_fallthru
          _
        // Predicated region
        $region45: #{tpu_custom_call.1} parent=19 // pred_check
          %p404 = pneg %p208
        $region46: #{tpu_custom_call.1} parent=19 // pred_check_branch
          %406 = sbr.rel (%p404) target = $region48
        $region47: #{tpu_custom_call.1} parent=19 // pred_region
          %p407 = scmp.lt.s32.totalorder %s28, 3
          %s408 = scalar_select %p407, %s28, 3
          %s409 = scalar_lea.vmem %s6, %s408
        $region48: #{tpu_custom_call.1} parent=19 // pred_fallthru
          _
        // Predicated region
        $region49: #{tpu_custom_call.1} parent=19 // pred_check
          %p410 = pneg %p234
        $region50: #{tpu_custom_call.1} parent=19 // pred_check_branch
          %412 = sbr.rel (%p410) target = $region52
        $region51: #{tpu_custom_call.1} parent=19 // pred_region
          %p413 = scmp.lt.s32.totalorder %s28, 3
          %s414 = scalar_select %p413, %s28, 3
          %s415 = smul.addr %s414, 4
          %s416 = smul.addr %s415, 8
          %s417 = scalar_lea.vmem %s7, %s416
        $region52: #{tpu_custom_call.1} parent=19 // pred_fallthru
          _
        // Predicated region
        $region53: #{tpu_custom_call.1} parent=19 // pred_check
          %p418 = pneg %p260
        $region54: #{tpu_custom_call.1} parent=19 // pred_check_branch
          %420 = sbr.rel (%p418) target = $region56
        $region55: #{tpu_custom_call.1} parent=19 // pred_region
          %p421 = scmp.lt.s32.totalorder %s28, 3
          %s422 = scalar_select %p421, %s28, 3
          %s423 = scalar_lea.vmem %s8, %s422
        $region56: #{tpu_custom_call.1} parent=19 // pred_fallthru
          _
        // Predicated region
        $region57: #{tpu_custom_call.1} parent=19 // pred_check
          %p424 = pneg %p286
        $region58: #{tpu_custom_call.1} parent=19 // pred_check_branch
          %426 = sbr.rel (%p424) target = $region60
        $region59: #{tpu_custom_call.1} parent=19 // pred_region
          %p427 = scmp.lt.s32.totalorder %s28, 3
          %s428 = scalar_select %p427, %s28, 3
          %s429 = smul.addr %s428, 8
          %s430 = scalar_lea.vmem %s9, %s429
        $region60: #{tpu_custom_call.1} parent=19 // pred_fallthru
          _
      $region20: #{tpu_custom_call.1} parent=5 // pred_fallthru
        _
      %p431 = scmp.le.s32.totalorder 1, %s20
      %p432 = scmp.lt.s32.totalorder %s20, 9
      %p433 = pnand %p431, %p432
      %p434 = pneg %p433
      // Predicated region
      $region61: #{tpu_custom_call.1} parent=5 // pred_check
        _
      $region62: #{tpu_custom_call.1} parent=5 // pred_check_branch
        %436 = sbr.rel (%p433) target = $region64
      $region63: #{tpu_custom_call.1} parent=5 // pred_region
        %s437 = ssub.s32 %s20, 1
        %p438 = scmp.lt.s32.totalorder %s29, 1
        %s439 = scalar_select %p438, %s29, 1
        %s440 = smul.addr %s439, 8
        %s441 = scalar_lea.vmem %s0, %s440
        %p442 = pneg %p58
        %p443 = pneg %p55
        %p444 = scmp.lt.s32.totalorder %s29, 1
        %s445 = scalar_select %p444, %s29, 1
        %s446 = smul.addr %s445, 8
        %s447 = scalar_lea.vmem %s1, %s446
        %p448 = pneg %p84
        %p449 = pneg %p81
        %p450 = scmp.lt.s32.totalorder %s29, 1
        %s451 = scalar_select %p450, %s29, 1
        %s452 = smul.addr %s451, 8
        %s453 = scalar_lea.vmem %s2, %s452
        %p454 = pneg %p110
        %p455 = pneg %p107
        %p456 = scmp.lt.s32.totalorder %s30, 3
        %s457 = scalar_select %p456, %s30, 3
        %s458 = smul.addr %s457, 4
        %s459 = smul.addr %s458, 8
        %s460 = scalar_lea.vmem %s3, %s459
        %p461 = pneg %p136
        %p462 = pneg %p133
        %p463 = scmp.lt.s32.totalorder %s30, 3
        %s464 = scalar_select %p463, %s30, 3
        %s465 = scalar_lea.vmem %s4, %s464
        %p466 = pneg %p162
        %p467 = pneg %p159
        %p468 = scmp.lt.s32.totalorder %s30, 3
        %s469 = scalar_select %p468, %s30, 3
        %s470 = smul.addr %s469, 4
        %s471 = smul.addr %s470, 8
        %s472 = scalar_lea.vmem %s5, %s471
        %p473 = pneg %p188
        %p474 = pneg %p185
        %p475 = scmp.lt.s32.totalorder %s30, 3
        %s476 = scalar_select %p475, %s30, 3
        %s477 = scalar_lea.vmem %s6, %s476
        %p478 = pneg %p214
        %p479 = pneg %p211
        %p480 = scmp.lt.s32.totalorder %s30, 3
        %s481 = scalar_select %p480, %s30, 3
        %s482 = smul.addr %s481, 4
        %s483 = smul.addr %s482, 8
        %s484 = scalar_lea.vmem %s7, %s483
        %p485 = pneg %p240
        %p486 = pneg %p237
        %p487 = scmp.lt.s32.totalorder %s30, 3
        %s488 = scalar_select %p487, %s30, 3
        %s489 = scalar_lea.vmem %s8, %s488
        %p490 = pneg %p266
        %p491 = pneg %p263
        %p492 = scmp.lt.s32.totalorder %s30, 3
        %s493 = scalar_select %p492, %s30, 3
        %s494 = smul.addr %s493, 8
        %s495 = scalar_lea.vmem %s9, %s494
        %p496 = pneg %p292
        %p497 = pneg %p289
        %p498 = pneg %p313
        %p499 = pneg %p310
        %p500 = pneg %p339
        %p501 = pneg %p336
        %s502 = sand.u32 %s326, 1
        %s503 = scalar_lea.sflag [#allocation4], %s502
        %s504 = sand.u32 %s326, 1
        %s505 = smul.addr %s504, 8
        %s506 = scalar_lea.vmem [#allocation3], %s505
        %p507 = scmp.lt.s32.totalorder %s29, 1
        %s508 = scalar_select %p507, %s29, 1
        %s509 = smul.addr %s508, 8
        %s510 = scalar_lea.vmem %s0, %s509
        %p511 = scmp.lt.s32.totalorder %s29, 1
        %s512 = scalar_select %p511, %s29, 1
        %s513 = smul.addr %s512, 8
        %s514 = scalar_lea.vmem %s1, %s513
        %p515 = scmp.lt.s32.totalorder %s29, 1
        %s516 = scalar_select %p515, %s29, 1
        %s517 = smul.addr %s516, 8
        %s518 = scalar_lea.vmem %s2, %s517
        %p519 = scmp.lt.s32.totalorder %s30, 3
        %s520 = scalar_select %p519, %s30, 3
        %s521 = smul.addr %s520, 4
        %s522 = smul.addr %s521, 8
        %s523 = scalar_lea.vmem %s3, %s522
        %p524 = scmp.lt.s32.totalorder %s30, 3
        %s525 = scalar_select %p524, %s30, 3
        %s526 = scalar_lea.vmem %s4, %s525
        %p527 = scmp.lt.s32.totalorder %s30, 3
        %s528 = scalar_select %p527, %s30, 3
        %s529 = smul.addr %s528, 4
        %s530 = smul.addr %s529, 8
        %s531 = scalar_lea.vmem %s5, %s530
        %p532 = scmp.lt.s32.totalorder %s30, 3
        %s533 = scalar_select %p532, %s30, 3
        %s534 = scalar_lea.vmem %s6, %s533
        %p535 = scmp.lt.s32.totalorder %s30, 3
        %s536 = scalar_select %p535, %s30, 3
        %s537 = smul.addr %s536, 4
        %s538 = smul.addr %s537, 8
        %s539 = scalar_lea.vmem %s7, %s538
        %p540 = scmp.lt.s32.totalorder %s30, 3
        %s541 = scalar_select %p540, %s30, 3
        %s542 = scalar_lea.vmem %s8, %s541
        %p543 = scmp.lt.s32.totalorder %s30, 3
        %s544 = scalar_select %p543, %s30, 3
        %s545 = smul.addr %s544, 8
        %s546 = scalar_lea.vmem %s9, %s545
        %p547 = scmp.eq.s32.totalorder %s30, 0
        // Predicated region
        $region65: #{tpu_custom_call.1} parent=63 // pred_check
          %p548 = pneg %p547
        $region66: #{tpu_custom_call.1} parent=63 // pred_check_branch
          %550 = sbr.rel (%p548) target = $region68
        $region67: #{tpu_custom_call.1} parent=63 // pred_region
          %vm551 = vcmask 261120
          %552 = vst.msk [vmem:[#allocation2] sm:$0xff] %vm551, 0.0
        $region68: #{tpu_custom_call.1} parent=63 // pred_fallthru
          _
        %v553 = vld [vmem:[%s510] sm:$0xff]
        %v554 = vld [vmem:[%s523] sm:$0xff]
        %v555 = vld [vmem:[%s523 + $0x8] sm:$0xff]
        %v556 = vld [vmem:[%s523 + $0x10] sm:$0xff]
        %v557 = vld [vmem:[%s523 + $0x18] sm:$0xff]
        %v558 = vld [vmem:[%s526] sm:$0x1]
        %v560 = vlaneseq
        %v561 = vshrl.u32 %v560, 7
        %v562 = vsub.s32 0, %v561
        %v563 = vrot.slane %v558, %v562
        %vm565 = vcmask 261120
        %v567 = vsel %vm565, %v553, 0
        %569 = vmatprep.subr.mxu0 0.0
        %570 = vmatpush1.msra.mxu0 %v554
        %571 = vmatprep.subr.mxu0 0.0
        %572 = vmatpush1.msra.mxu0 %v555
        %573 = vmatprep.subr.mxu0 0.0
        %574 = vmatpush1.msra.mxu0 %v556
        %575 = vmatprep.subr.mxu0 0.0
        %576 = vmatpush1.msra.mxu0 %v557
        %577 = vmatprep.subr.mxu0 0.0
        %578 = vmatpush1.msra.mxu0 0.0
        %579 = vmatprep.subr.mxu0 0.0
        %580 = vmatpush1.msra.mxu0 0.0
        %581 = vmatprep.subr.mxu0 0.0
        %582 = vmatpush1.msra.mxu0 0.0
        %583 = vmatprep.subr.mxu0 0.0
        %584 = vmatpush1.msra.mxu0 0.0
        %585 = vmatprep.subr.mxu0 0.0
        %586 = vmatpush1.msra.mxu0 0.0
        %587 = vmatprep.subr.mxu0 0.0
        %588 = vmatpush1.msra.mxu0 0.0
        %589 = vmatprep.subr.mxu0 0.0
        %590 = vmatpush1.msra.mxu0 0.0
        %591 = vmatprep.subr.mxu0 0.0
        %592 = vmatpush1.msra.mxu0 0.0
        %593 = vmatprep.subr.mxu0 0.0
        %594 = vmatpush1.msra.mxu0 0.0
        %595 = vmatprep.subr.mxu0 0.0
        %596 = vmatpush1.msra.mxu0 0.0
        %597 = vmatprep.subr.mxu0 0.0
        %598 = vmatpush1.msra.mxu0 0.0
        %599 = vmatprep.subr.mxu0 0.0
        %600 = vmatpush1.msra.mxu0 0.0
        %601 = vmatprep.subr.mxu0 0.0
        %602 = vmatpush1.msra.mxu0 0.0
        %603 = vmatprep.subr.mxu0 0.0
        %604 = vmatpush1.msra.mxu0 0.0
        %605 = vmatprep.subr.mxu0 0.0
        %606 = vmatpush1.msra.mxu0 0.0
        %607 = vmatprep.subr.mxu0 0.0
        %608 = vmatpush1.msra.mxu0 0.0
        %609 = vmatprep.subr.mxu0 0.0
        %610 = vmatpush1.msra.mxu0 0.0
        %611 = vmatprep.subr.mxu0 0.0
        %612 = vmatpush1.msra.mxu0 0.0
        %613 = vmatprep.subr.mxu0 0.0
        %614 = vmatpush1.msra.mxu0 0.0
        %615 = vmatprep.subr.mxu0 0.0
        %616 = vmatpush1.msra.mxu0 0.0
        %617 = vmatprep.subr.mxu0 0.0
        %618 = vmatpush1.msra.mxu0 0.0
        %619 = vmatprep.subr.mxu0 0.0
        %620 = vmatpush1.msra.mxu0 0.0
        %621 = vmatprep.subr.mxu0 0.0
        %622 = vmatpush1.msra.mxu0 0.0
        %623 = vmatprep.subr.mxu0 0.0
        %624 = vmatpush1.msra.mxu0 0.0
        %625 = vmatprep.subr.mxu0 0.0
        %626 = vmatpush1.msra.mxu0 0.0
        %627 = vmatprep.subr.mxu0 0.0
        %628 = vmatpush1.msra.mxu0 0.0
        %629 = vmatprep.subr.mxu0 0.0
        %630 = vmatpush1.msra.mxu0 0.0
        %631 = vmatprep.subr.mxu0 0.0
        %632 = vmatpush1.msra.mxu0 0.0
        %633 = vmatprep.mubr.f32.mxu0 0.0
        %634 = vmatmul.mubr.f32.gmra.mrb[0].mxu0 %v567
        %v635 = vpop.f32.mrb[0].mxu0
        %v636 = vadd.f32 %v563, %v635
        %v637 = vpop.f32.mrb[0].mxu0
        %638 = vdwg.mxu0
        %v639 = vmul.f32 %v636, 0.35355338
        %v640 = vld [vmem:[%s514] sm:$0xff]
        %v641 = vld [vmem:[%s531] sm:$0xff]
        %v642 = vld [vmem:[%s531 + $0x8] sm:$0xff]
        %v643 = vld [vmem:[%s531 + $0x10] sm:$0xff]
        %v644 = vld [vmem:[%s531 + $0x18] sm:$0xff]
        %v645 = vld [vmem:[%s534] sm:$0x1]
        %v647 = vlaneseq
        %v648 = vshrl.u32 %v647, 7
        %v649 = vsub.s32 0, %v648
        %v650 = vrot.slane %v645, %v649
        %v653 = vsel %vm565, %v640, 0
        %655 = vmatprep.subr.mxu0 0.0
        %656 = vmatpush1.msra.mxu0 %v641
        %657 = vmatprep.subr.mxu0 0.0
        %658 = vmatpush1.msra.mxu0 %v642
        %659 = vmatprep.subr.mxu0 0.0
        %660 = vmatpush1.msra.mxu0 %v643
        %661 = vmatprep.subr.mxu0 0.0
        %662 = vmatpush1.msra.mxu0 %v644
        %663 = vmatprep.subr.mxu0 0.0
        %664 = vmatpush1.msra.mxu0 0.0
        %665 = vmatprep.subr.mxu0 0.0
        %666 = vmatpush1.msra.mxu0 0.0
        %667 = vmatprep.subr.mxu0 0.0
        %668 = vmatpush1.msra.mxu0 0.0
        %669 = vmatprep.subr.mxu0 0.0
        %670 = vmatpush1.msra.mxu0 0.0
        %671 = vmatprep.subr.mxu0 0.0
        %672 = vmatpush1.msra.mxu0 0.0
        %673 = vmatprep.subr.mxu0 0.0
        %674 = vmatpush1.msra.mxu0 0.0
        %675 = vmatprep.subr.mxu0 0.0
        %676 = vmatpush1.msra.mxu0 0.0
        %677 = vmatprep.subr.mxu0 0.0
        %678 = vmatpush1.msra.mxu0 0.0
        %679 = vmatprep.subr.mxu0 0.0
        %680 = vmatpush1.msra.mxu0 0.0
        %681 = vmatprep.subr.mxu0 0.0
        %682 = vmatpush1.msra.mxu0 0.0
        %683 = vmatprep.subr.mxu0 0.0
        %684 = vmatpush1.msra.mxu0 0.0
        %685 = vmatprep.subr.mxu0 0.0
        %686 = vmatpush1.msra.mxu0 0.0
        %687 = vmatprep.subr.mxu0 0.0
        %688 = vmatpush1.msra.mxu0 0.0
        %689 = vmatprep.subr.mxu0 0.0
        %690 = vmatpush1.msra.mxu0 0.0
        %691 = vmatprep.subr.mxu0 0.0
        %692 = vmatpush1.msra.mxu0 0.0
        %693 = vmatprep.subr.mxu0 0.0
        %694 = vmatpush1.msra.mxu0 0.0
        %695 = vmatprep.subr.mxu0 0.0
        %696 = vmatpush1.msra.mxu0 0.0
        %697 = vmatprep.subr.mxu0 0.0
        %698 = vmatpush1.msra.mxu0 0.0
        %699 = vmatprep.subr.mxu0 0.0
        %700 = vmatpush1.msra.mxu0 0.0
        %701 = vmatprep.subr.mxu0 0.0
        %702 = vmatpush1.msra.mxu0 0.0
        %703 = vmatprep.subr.mxu0 0.0
        %704 = vmatpush1.msra.mxu0 0.0
        %705 = vmatprep.subr.mxu0 0.0
        %706 = vmatpush1.msra.mxu0 0.0
        %707 = vmatprep.subr.mxu0 0.0
        %708 = vmatpush1.msra.mxu0 0.0
        %709 = vmatprep.subr.mxu0 0.0
        %710 = vmatpush1.msra.mxu0 0.0
        %711 = vmatprep.subr.mxu0 0.0
        %712 = vmatpush1.msra.mxu0 0.0
        %713 = vmatprep.subr.mxu0 0.0
        %714 = vmatpush1.msra.mxu0 0.0
        %715 = vmatprep.subr.mxu0 0.0
        %716 = vmatpush1.msra.mxu0 0.0
        %717 = vmatprep.subr.mxu0 0.0
        %718 = vmatpush1.msra.mxu0 0.0
        %719 = vmatprep.mubr.f32.mxu0 0.0
        %720 = vmatmul.mubr.f32.gmra.mrb[0].mxu0 %v653
        %v721 = vpop.f32.mrb[0].mxu0
        %v722 = vadd.f32 %v650, %v721
        %v723 = vpop.f32.mrb[0].mxu0
        %724 = vdwg.mxu0
        %v725 = vld [vmem:[%s518] sm:$0xff]
        %v726 = vld [vmem:[%s539] sm:$0xff]
        %v727 = vld [vmem:[%s539 + $0x8] sm:$0xff]
        %v728 = vld [vmem:[%s539 + $0x10] sm:$0xff]
        %v729 = vld [vmem:[%s539 + $0x18] sm:$0xff]
        %v730 = vld [vmem:[%s542] sm:$0x1]
        %v732 = vlaneseq
        %v733 = vshrl.u32 %v732, 7
        %v734 = vsub.s32 0, %v733
        %v735 = vrot.slane %v730, %v734
        %v738 = vsel %vm565, %v725, 0
        %740 = vmatprep.subr.mxu0 0.0
        %741 = vmatpush1.msra.mxu0 %v726
        %742 = vmatprep.subr.mxu0 0.0
        %743 = vmatpush1.msra.mxu0 %v727
        %744 = vmatprep.subr.mxu0 0.0
        %745 = vmatpush1.msra.mxu0 %v728
        %746 = vmatprep.subr.mxu0 0.0
        %747 = vmatpush1.msra.mxu0 %v729
        %748 = vmatprep.subr.mxu0 0.0
        %749 = vmatpush1.msra.mxu0 0.0
        %750 = vmatprep.subr.mxu0 0.0
        %751 = vmatpush1.msra.mxu0 0.0
        %752 = vmatprep.subr.mxu0 0.0
        %753 = vmatpush1.msra.mxu0 0.0
        %754 = vmatprep.subr.mxu0 0.0
        %755 = vmatpush1.msra.mxu0 0.0
        %756 = vmatprep.subr.mxu0 0.0
        %757 = vmatpush1.msra.mxu0 0.0
        %758 = vmatprep.subr.mxu0 0.0
        %759 = vmatpush1.msra.mxu0 0.0
        %760 = vmatprep.subr.mxu0 0.0
        %761 = vmatpush1.msra.mxu0 0.0
        %762 = vmatprep.subr.mxu0 0.0
        %763 = vmatpush1.msra.mxu0 0.0
        %764 = vmatprep.subr.mxu0 0.0
        %765 = vmatpush1.msra.mxu0 0.0
        %766 = vmatprep.subr.mxu0 0.0
        %767 = vmatpush1.msra.mxu0 0.0
        %768 = vmatprep.subr.mxu0 0.0
        %769 = vmatpush1.msra.mxu0 0.0
        %770 = vmatprep.subr.mxu0 0.0
        %771 = vmatpush1.msra.mxu0 0.0
        %772 = vmatprep.subr.mxu0 0.0
        %773 = vmatpush1.msra.mxu0 0.0
        %774 = vmatprep.subr.mxu0 0.0
        %775 = vmatpush1.msra.mxu0 0.0
        %776 = vmatprep.subr.mxu0 0.0
        %777 = vmatpush1.msra.mxu0 0.0
        %778 = vmatprep.subr.mxu0 0.0
        %779 = vmatpush1.msra.mxu0 0.0
        %780 = vmatprep.subr.mxu0 0.0
        %781 = vmatpush1.msra.mxu0 0.0
        %782 = vmatprep.subr.mxu0 0.0
        %783 = vmatpush1.msra.mxu0 0.0
        %784 = vmatprep.subr.mxu0 0.0
        %785 = vmatpush1.msra.mxu0 0.0
        %786 = vmatprep.subr.mxu0 0.0
        %787 = vmatpush1.msra.mxu0 0.0
        %788 = vmatprep.subr.mxu0 0.0
        %789 = vmatpush1.msra.mxu0 0.0
        %790 = vmatprep.subr.mxu0 0.0
        %791 = vmatpush1.msra.mxu0 0.0
        %792 = vmatprep.subr.mxu0 0.0
        %793 = vmatpush1.msra.mxu0 0.0
        %794 = vmatprep.subr.mxu0 0.0
        %795 = vmatpush1.msra.mxu0 0.0
        %796 = vmatprep.subr.mxu0 0.0
        %797 = vmatpush1.msra.mxu0 0.0
        %798 = vmatprep.subr.mxu0 0.0
        %799 = vmatpush1.msra.mxu0 0.0
        %800 = vmatprep.subr.mxu0 0.0
        %801 = vmatpush1.msra.mxu0 0.0
        %802 = vmatprep.subr.mxu0 0.0
        %803 = vmatpush1.msra.mxu0 0.0
        %804 = vmatprep.mubr.f32.mxu0 0.0
        %805 = vmatmul.mubr.f32.gmra.mrb[0].mxu0 %v738
        %v806 = vpop.f32.mrb[0].mxu0
        %v807 = vadd.f32 %v735, %v806
        %v808 = vpop.f32.mrb[0].mxu0
        %809 = vdwg.mxu0
        %v810 = vld [vmem:[%s546] sm:$0xff]
        %vm811 = vcmask 64512
        %v813 = vsel %vm811, %v639, 0
        %v816 = vsel %vm811, %v722, 0
        %818 = vmatprep.subr.mxu0 0.0
        %819 = vmatpush1.xpose.msra.mxu0 %v816
        %820 = vmatprep.subr.mxu0 0.0
        %821 = vmatpush1.xpose.msra.mxu0 0.0
        %822 = vmatprep.subr.mxu0 0.0
        %823 = vmatpush1.xpose.msra.mxu0 0.0
        %824 = vmatprep.subr.mxu0 0.0
        %825 = vmatpush1.xpose.msra.mxu0 0.0
        %826 = vmatprep.subr.mxu0 0.0
        %827 = vmatpush1.xpose.msra.mxu0 0.0
        %828 = vmatprep.subr.mxu0 0.0
        %829 = vmatpush1.xpose.msra.mxu0 0.0
        %830 = vmatprep.subr.mxu0 0.0
        %831 = vmatpush1.xpose.msra.mxu0 0.0
        %832 = vmatprep.subr.mxu0 0.0
        %833 = vmatpush1.xpose.msra.mxu0 0.0
        %834 = vmatprep.subr.mxu0 0.0
        %835 = vmatpush1.xpose.msra.mxu0 0.0
        %836 = vmatprep.subr.mxu0 0.0
        %837 = vmatpush1.xpose.msra.mxu0 0.0
        %838 = vmatprep.subr.mxu0 0.0
        %839 = vmatpush1.xpose.msra.mxu0 0.0
        %840 = vmatprep.subr.mxu0 0.0
        %841 = vmatpush1.xpose.msra.mxu0 0.0
        %842 = vmatprep.subr.mxu0 0.0
        %843 = vmatpush1.xpose.msra.mxu0 0.0
        %844 = vmatprep.subr.mxu0 0.0
        %845 = vmatpush1.xpose.msra.mxu0 0.0
        %846 = vmatprep.subr.mxu0 0.0
        %847 = vmatpush1.xpose.msra.mxu0 0.0
        %848 = vmatprep.subr.mxu0 0.0
        %849 = vmatpush1.xpose.msra.mxu0 0.0
        %850 = vmatprep.subr.mxu0 0.0
        %851 = vmatpush1.xpose.msra.mxu0 0.0
        %852 = vmatprep.subr.mxu0 0.0
        %853 = vmatpush1.xpose.msra.mxu0 0.0
        %854 = vmatprep.subr.mxu0 0.0
        %855 = vmatpush1.xpose.msra.mxu0 0.0
        %856 = vmatprep.subr.mxu0 0.0
        %857 = vmatpush1.xpose.msra.mxu0 0.0
        %858 = vmatprep.subr.mxu0 0.0
        %859 = vmatpush1.xpose.msra.mxu0 0.0
        %860 = vmatprep.subr.mxu0 0.0
        %861 = vmatpush1.xpose.msra.mxu0 0.0
        %862 = vmatprep.subr.mxu0 0.0
        %863 = vmatpush1.xpose.msra.mxu0 0.0
        %864 = vmatprep.subr.mxu0 0.0
        %865 = vmatpush1.xpose.msra.mxu0 0.0
        %866 = vmatprep.subr.mxu0 0.0
        %867 = vmatpush1.xpose.msra.mxu0 0.0
        %868 = vmatprep.subr.mxu0 0.0
        %869 = vmatpush1.xpose.msra.mxu0 0.0
        %870 = vmatprep.subr.mxu0 0.0
        %871 = vmatpush1.xpose.msra.mxu0 0.0
        %872 = vmatprep.subr.mxu0 0.0
        %873 = vmatpush1.xpose.msra.mxu0 0.0
        %874 = vmatprep.subr.mxu0 0.0
        %875 = vmatpush1.xpose.msra.mxu0 0.0
        %876 = vmatprep.subr.mxu0 0.0
        %877 = vmatpush1.xpose.msra.mxu0 0.0
        %878 = vmatprep.subr.mxu0 0.0
        %879 = vmatpush1.xpose.msra.mxu0 0.0
        %880 = vmatprep.subr.mxu0 0.0
        %881 = vmatpush1.xpose.msra.mxu0 0.0
        %882 = vmatprep.mubr.f32.mxu0 0.0
        %883 = vmatmul.mubr.f32.gmra.mrb[0].mxu0 %v813
        %v884 = vpop.f32.mrb[0].mxu0
        %v885 = vadd.f32 0.0, %v884
        %v886 = vpop.f32.mrb[0].mxu0
        %887 = vdwg.mxu0
        %v888 = vlaneseq
        %v889 = vshrl.u32 %v888, 7
        %v890 = vlaneseq
        %v891 = vand.u32 %v890, 127
        %vm892 = vcmp.le.s32.totalorder %v891, %v889
        %v893 = vsel %vm892, %v885, -1e+30
        %v894 = vsel %vm811, %v893, -inf
        %895 = vmax.xlane.f32.xlu0 %v894
        %v896 = vpop.xlane.xlu0 %895
        %v897 = vsub.f32 %v893, %v896
        %v898 = vmul.f32 %v897, 1.442695
        %v899 = vpow.pop %v898
        %v900 = vsel %vm811, %v899, 0.0
        %901 = vadd.xlane.f32.xlu0 %v900
        %v902 = vpop.xlane.xlu0 %901
        %v903 = vrcp.pop %v902
        %v904 = vmul.f32 %v899, %v903
        %v906 = vsel %vm811, %v904, 0
        %908 = vmatprep.subr.mxu0 0.0
        %909 = vmatpush1.msra.mxu0 %v807
        %910 = vmatprep.subr.mxu0 0.0
        %911 = vmatpush1.msra.mxu0 0.0
        %912 = vmatprep.subr.mxu0 0.0
        %913 = vmatpush1.msra.mxu0 0.0
        %914 = vmatprep.subr.mxu0 0.0
        %915 = vmatpush1.msra.mxu0 0.0
        %916 = vmatprep.subr.mxu0 0.0
        %917 = vmatpush1.msra.mxu0 0.0
        %918 = vmatprep.subr.mxu0 0.0
        %919 = vmatpush1.msra.mxu0 0.0
        %920 = vmatprep.subr.mxu0 0.0
        %921 = vmatpush1.msra.mxu0 0.0
        %922 = vmatprep.subr.mxu0 0.0
        %923 = vmatpush1.msra.mxu0 0.0
        %924 = vmatprep.subr.mxu0 0.0
        %925 = vmatpush1.msra.mxu0 0.0
        %926 = vmatprep.subr.mxu0 0.0
        %927 = vmatpush1.msra.mxu0 0.0
        %928 = vmatprep.subr.mxu0 0.0
        %929 = vmatpush1.msra.mxu0 0.0
        %930 = vmatprep.subr.mxu0 0.0
        %931 = vmatpush1.msra.mxu0 0.0
        %932 = vmatprep.subr.mxu0 0.0
        %933 = vmatpush1.msra.mxu0 0.0
        %934 = vmatprep.subr.mxu0 0.0
        %935 = vmatpush1.msra.mxu0 0.0
        %936 = vmatprep.subr.mxu0 0.0
        %937 = vmatpush1.msra.mxu0 0.0
        %938 = vmatprep.subr.mxu0 0.0
        %939 = vmatpush1.msra.mxu0 0.0
        %940 = vmatprep.subr.mxu0 0.0
        %941 = vmatpush1.msra.mxu0 0.0
        %942 = vmatprep.subr.mxu0 0.0
        %943 = vmatpush1.msra.mxu0 0.0
        %944 = vmatprep.subr.mxu0 0.0
        %945 = vmatpush1.msra.mxu0 0.0
        %946 = vmatprep.subr.mxu0 0.0
        %947 = vmatpush1.msra.mxu0 0.0
        %948 = vmatprep.subr.mxu0 0.0
        %949 = vmatpush1.msra.mxu0 0.0
        %950 = vmatprep.subr.mxu0 0.0
        %951 = vmatpush1.msra.mxu0 0.0
        %952 = vmatprep.subr.mxu0 0.0
        %953 = vmatpush1.msra.mxu0 0.0
        %954 = vmatprep.subr.mxu0 0.0
        %955 = vmatpush1.msra.mxu0 0.0
        %956 = vmatprep.subr.mxu0 0.0
        %957 = vmatpush1.msra.mxu0 0.0
        %958 = vmatprep.subr.mxu0 0.0
        %959 = vmatpush1.msra.mxu0 0.0
        %960 = vmatprep.subr.mxu0 0.0
        %961 = vmatpush1.msra.mxu0 0.0
        %962 = vmatprep.subr.mxu0 0.0
        %963 = vmatpush1.msra.mxu0 0.0
        %964 = vmatprep.subr.mxu0 0.0
        %965 = vmatpush1.msra.mxu0 0.0
        %966 = vmatprep.subr.mxu0 0.0
        %967 = vmatpush1.msra.mxu0 0.0
        %968 = vmatprep.subr.mxu0 0.0
        %969 = vmatpush1.msra.mxu0 0.0
        %970 = vmatprep.subr.mxu0 0.0
        %971 = vmatpush1.msra.mxu0 0.0
        %972 = vmatprep.mubr.f32.mxu0 0.0
        %973 = vmatmul.mubr.f32.gmra.mrb[0].mxu0 %v906
        %v974 = vpop.f32.mrb[0].mxu0
        %v975 = vadd.f32 0.0, %v974
        %v976 = vpop.f32.mrb[0].mxu0
        %977 = vdwg.mxu0
        %v979 = vsel %vm811, %v975, 0
        %981 = vmatprep.subr.mxu0 0.0
        %982 = vmatpush1.msra.mxu0 %v810
        %983 = vmatprep.subr.mxu0 0.0
        %984 = vmatpush1.msra.mxu0 0.0
        %985 = vmatprep.subr.mxu0 0.0
        %986 = vmatpush1.msra.mxu0 0.0
        %987 = vmatprep.subr.mxu0 0.0
        %988 = vmatpush1.msra.mxu0 0.0
        %989 = vmatprep.subr.mxu0 0.0
        %990 = vmatpush1.msra.mxu0 0.0
        %991 = vmatprep.subr.mxu0 0.0
        %992 = vmatpush1.msra.mxu0 0.0
        %993 = vmatprep.subr.mxu0 0.0
        %994 = vmatpush1.msra.mxu0 0.0
        %995 = vmatprep.subr.mxu0 0.0
        %996 = vmatpush1.msra.mxu0 0.0
        %997 = vmatprep.subr.mxu0 0.0
        %998 = vmatpush1.msra.mxu0 0.0
        %999 = vmatprep.subr.mxu0 0.0
        %1000 = vmatpush1.msra.mxu0 0.0
        %1001 = vmatprep.subr.mxu0 0.0
        %1002 = vmatpush1.msra.mxu0 0.0
        %1003 = vmatprep.subr.mxu0 0.0
        %1004 = vmatpush1.msra.mxu0 0.0
        %1005 = vmatprep.subr.mxu0 0.0
        %1006 = vmatpush1.msra.mxu0 0.0
        %1007 = vmatprep.subr.mxu0 0.0
        %1008 = vmatpush1.msra.mxu0 0.0
        %1009 = vmatprep.subr.mxu0 0.0
        %1010 = vmatpush1.msra.mxu0 0.0
        %1011 = vmatprep.subr.mxu0 0.0
        %1012 = vmatpush1.msra.mxu0 0.0
        %1013 = vmatprep.subr.mxu0 0.0
        %1014 = vmatpush1.msra.mxu0 0.0
        %1015 = vmatprep.subr.mxu0 0.0
        %1016 = vmatpush1.msra.mxu0 0.0
        %1017 = vmatprep.subr.mxu0 0.0
        %1018 = vmatpush1.msra.mxu0 0.0
        %1019 = vmatprep.subr.mxu0 0.0
        %1020 = vmatpush1.msra.mxu0 0.0
        %1021 = vmatprep.subr.mxu0 0.0
        %1022 = vmatpush1.msra.mxu0 0.0
        %1023 = vmatprep.subr.mxu0 0.0
        %1024 = vmatpush1.msra.mxu0 0.0
        %1025 = vmatprep.subr.mxu0 0.0
        %1026 = vmatpush1.msra.mxu0 0.0
        %1027 = vmatprep.subr.mxu0 0.0
        %1028 = vmatpush1.msra.mxu0 0.0
        %1029 = vmatprep.subr.mxu0 0.0
        %1030 = vmatpush1.msra.mxu0 0.0
        %1031 = vmatprep.subr.mxu0 0.0
        %1032 = vmatpush1.msra.mxu0 0.0
        %1033 = vmatprep.subr.mxu0 0.0
        %1034 = vmatpush1.msra.mxu0 0.0
        %1035 = vmatprep.subr.mxu0 0.0
        %1036 = vmatpush1.msra.mxu0 0.0
        %1037 = vmatprep.subr.mxu0 0.0
        %1038 = vmatpush1.msra.mxu0 0.0
        %1039 = vmatprep.subr.mxu0 0.0
        %1040 = vmatpush1.msra.mxu0 0.0
        %1041 = vmatprep.subr.mxu0 0.0
        %1042 = vmatpush1.msra.mxu0 0.0
        %1043 = vmatprep.subr.mxu0 0.0
        %1044 = vmatpush1.msra.mxu0 0.0
        %1045 = vmatprep.mubr.f32.mxu0 0.0
        %1046 = vmatmul.mubr.f32.gmra.mrb[0].mxu0 %v979
        %v1047 = vpop.f32.mrb[0].mxu0
        %v1048 = vadd.f32 0.0, %v1047
        %v1049 = vpop.f32.mrb[0].mxu0
        %1050 = vdwg.mxu0
        %v1051 = vld [vmem:[#allocation2] sm:$0xff]
        %v1052 = vadd.f32 %v1051, %v1048
        %1053 = vst.msk [vmem:[#allocation2] sm:$0xff] %vm565, %v1052
        %p1054 = scmp.eq.s32.totalorder %s30, 3
        // Predicated region
        $region69: #{tpu_custom_call.1} parent=63 // pred_check
          %p1055 = pneg %p1054
        $region70: #{tpu_custom_call.1} parent=63 // pred_check_branch
          %1057 = sbr.rel (%p1055) target = $region72
        $region71: #{tpu_custom_call.1} parent=63 // pred_region
          %v1058 = vld [vmem:[#allocation2] sm:$0xff]
          %v1059 = vld [vmem:[%s10] sm:$0x1]
          %v1061 = vlaneseq
          %v1062 = vshrl.u32 %v1061, 7
          %v1063 = vsub.s32 0, %v1062
          %v1064 = vrot.slane %v1059, %v1063
          %v1066 = vadd.f32 %v1058, %v1064
          %1067 = vst.msk [vmem:[%s506] sm:$0xff] %vm565, %v1066
        $region72: #{tpu_custom_call.1} parent=63 // pred_fallthru
          _
        %s1068 = sand.u32 %s326, 1
        %s1069 = scalar_lea.sflag [#allocation4], %s1068
        %s1070 = sand.u32 %s326, 1
        %s1071 = smul.addr %s1070, 8
        %s1072 = scalar_lea.vmem [#allocation3], %s1071
        // Predicated region
        $region73: #{tpu_custom_call.1} parent=63 // pred_check
          %p1073 = pneg %p336
        $region74: #{tpu_custom_call.1} parent=63 // pred_check_branch
          %1075 = sbr.rel (%p1073) target = $region76
        $region75: #{tpu_custom_call.1} parent=63 // pred_region
          %s1077 = ssub.s32 128, 128
          %1078 = vsyncadd %s1069, %s1077
          %s1079 = smul.addr %s29, 128
          %s1080 = scalar_lea.hbm %s11, %s1079
          %s1082 = sshll.u32 %s1072, 4
          %s1083 = int_to_ptr.vmem [resolvable:$true] %s1082
          %1085 = dma.vmem_to_hbm [thread:$0]  %s1083, 128, %s1080, %s1069
        $region76: #{tpu_custom_call.1} parent=63 // pred_fallthru
          _
      $region64: #{tpu_custom_call.1} parent=5 // pred_fallthru
        _
      %p1086 = scmp.le.s32.totalorder 2, %s20
      // Predicated region
      $region77: #{tpu_custom_call.1} parent=5 // pred_check
        %p1087 = pneg %p1086
      $region78: #{tpu_custom_call.1} parent=5 // pred_check_branch
        %1089 = sbr.rel (%p1087) target = $region80
      $region79: #{tpu_custom_call.1} parent=5 // pred_region
        %s1090 = ssub.s32 %s20, 2
        // Predicated region
        $region81: #{tpu_custom_call.1} parent=79 // pred_check
          %p1091 = pneg %p342
        $region82: #{tpu_custom_call.1} parent=79 // pred_check_branch
          %1093 = sbr.rel (%p1091) target = $region84
        $region83: #{tpu_custom_call.1} parent=79 // pred_region
          %s1094 = sand.u32 %s327, 1
          %s1095 = scalar_lea.sflag [#allocation4], %s1094
          %s1096 = sand.u32 %s327, 1
          %s1097 = smul.addr %s1096, 8
          %s1098 = scalar_lea.vmem [#allocation3], %s1097
          %1099 = dma.done %s1095, 128
        $region84: #{tpu_custom_call.1} parent=79 // pred_fallthru
          _
      $region80: #{tpu_custom_call.1} parent=5 // pred_fallthru
        _
    $region6: #{tpu_custom_call.1} parent=1 // loop_footer
      %s24 = sadd.s32 1, %s20
    $region7: #{tpu_custom_call.1} parent=1 // loop_footer_branch
      %19 = sbr.rel target = $region3
    $region8: #{tpu_custom_call.1} parent=1 // loop_exit
      _
    %1100 = vsyncpa [#allocation4], 1
    %s1101 = scalar_lea.sflag [#allocation4], 1
    %1102 = vsyncpa %s1101, 1

</llo_original>
